<compile_context>
chip_gen: v7x
topology: tpu7x:2x2x1
jax: 0.10.0
libtpu: 0.0.40
codegen_flags: <defaults>
</compile_context>

<pallas_src>
import jax
import jax.numpy as jnp
from jax.experimental import pallas as pl
from jax.experimental.pallas import tpu as pltpu


def _copy_kernel(x_ref, o_ref):
    # Straight lane-dense copy of one (row_tile, cols) block.
    o_ref[...] = x_ref[...]


def _pick_row_tile(rows, cols, itemsize, target_bytes=2 * 1024 * 1024):
    """Largest power-of-two-scaled multiple-of-8 divisor of `rows` whose block
    stays under ~2 MiB; falls back to the full row count (full array dims are
    always a legal block shape)."""
    full_bytes = rows * cols * itemsize
    if full_bytes <= target_bytes or rows % 8 != 0:
        return rows
    tile = 8
    while (tile * 2) * cols * itemsize <= target_bytes and rows % (tile * 2) == 0:
        tile *= 2
    return tile


def split_concat(x):
    """Pallas implementation of cat(split(x, [1,1,1], dim=1), dim=1)."""
    N, C, H, W = x.shape
    assert C == 3, "forward requires exactly 3 channels (split([1,1,1], dim=1))"

    rows, cols = N * C, H * W
    x2 = x.reshape(rows, cols)  # lane-dense 2D slab (contiguous reshape)

    row_tile = _pick_row_tile(rows, cols, x2.dtype.itemsize)
    grid = (rows // row_tile,)

    out2 = pl.pallas_call(
        _copy_kernel,
        out_shape=jax.ShapeDtypeStruct((rows, cols), x.dtype),
        grid_spec=pltpu.PrefetchScalarGridSpec(
            num_scalar_prefetch=0,
            grid=grid,
            in_specs=[pl.BlockSpec((row_tile, cols), lambda i: (i, 0))],
            out_specs=pl.BlockSpec((row_tile, cols), lambda i: (i, 0)),
        ),
        compiler_params=pltpu.CompilerParams(
            dimension_semantics=("parallel",)),
    )(x2)

    return out2.reshape(N, C, H, W)


class Model:
    def __init__(self):
        # Mirror torch.nn.Linear(1, 1) from __init__ (unused in forward).
        # Deterministic init: weight=0.5, bias=0.1.
        self.linear_w = jnp.full((1, 1), 0.5, dtype=jnp.float32)
        self.linear_b = jnp.full((1,), 0.1, dtype=jnp.float32)

    def forward(self, v1):
        # Hot path (split + concat copy) in Pallas, done as one lane-dense copy.
        concatenated = split_concat(v1)
        # Return the splits as slices of the concatenated result (numerically
        # identical to split(v1)), avoiding a second full-tensor read of v1.
        splits = tuple(
            jax.lax.slice_in_dim(concatenated, i, i + 1, axis=1) for i in range(3)
        )
        return concatenated, splits


if __name__ == "__main__":
    key = jax.random.PRNGKey(0)
    # Small shape consistent with forward: dim=1 must be exactly 3.
    x = jax.random.normal(key, (2, 3, 16, 16), dtype=jnp.float32)

    model = Model()
    concat_out, splits_out = model.forward(x)

    concat_out = jax.block_until_ready(concat_out)
    splits_out = jax.block_until_ready(splits_out)

    # Sanity checks against reference semantics.
    assert concat_out.shape == x.shape
    assert jnp.allclose(concat_out, x), "concat of splits must reproduce input"
    for i, s in enumerate(splits_out):
        assert s.shape == (2, 1, 16, 16)
        assert jnp.allclose(s, x[:, i : i + 1]), "split slice mismatch"

    print("KERNEL_OK")
</pallas_src>

<mosaic_0001>
module attributes {stable_mosaic.version = 11 : i64} {
  func.func @_copy_kernel(%arg0: i32, %arg1: memref<6x256xf32, #tpu.memory_space<vmem>>, %arg2: memref<6x256xf32, #tpu.memory_space<vmem>>) attributes {dimension_semantics = [#tpu.dimension_semantics<parallel>], iteration_bounds = array<i64: 1>, scalar_prefetch = 0 : i64, scratch_operands = 0 : i64, tpu.core_type = #tpu.core_type<tc>, window_params = [{transform_indices = @transform_0, window_bounds = array<i64: 6, 256>}, {transform_indices = @transform_1, window_bounds = array<i64: 6, 256>}]} {
    %c0 = arith.constant 0 : index
    %c0_0 = arith.constant 0 : index
    %0 = vector.load %arg1[%c0, %c0_0] : memref<6x256xf32, #tpu.memory_space<vmem>>, vector<6x256xf32>
    %c0_1 = arith.constant 0 : index
    %c0_2 = arith.constant 0 : index
    %1 = vector.load %arg2[%c0_1, %c0_2] : memref<6x256xf32, #tpu.memory_space<vmem>>, vector<6x256xf32>
    tpu.vector_store %arg2[%c0_1, %c0_2], %0 {strides = array<i32>} : memref<6x256xf32, #tpu.memory_space<vmem>>, vector<6x256xf32>,
    return
  }
  func.func @transform_0(%arg0: i32) -> (i32, i32) {
    %c0_i32 = arith.constant 0 : i32
    %c0_i32_0 = arith.constant 0 : i32
    return %arg0, %c0_i32 : i32, i32
  }
  func.func @transform_1(%arg0: i32) -> (i32, i32) {
    %c0_i32 = arith.constant 0 : i32
    %c0_i32_0 = arith.constant 0 : i32
    return %arg0, %c0_i32 : i32, i32
  }
}

</mosaic_0001>

<llo_original>
// kernel: tpu_custom_call.1
$region0: #{tpu_custom_call.1}
  #allocation0 [shape = 'u32[]', space=smem, size = 0x4, offset = 0x4, fixed_abs, tag = 'smem constant byte address 0x4 - core index']
  #allocation1 [shape = 'u32[144,128]{1,0:T(1,128)}', space=vmem, size = 0x12000, scoped, tag = 'internal scratch']
  %s0 = inlined_call_operand.hbm [shape: f32[6,256], index: 0, kind: input, shape index: {}]
  %s1 = inlined_call_operand.hbm [shape: f32[6,256], index: 1, kind: output, shape index: {}]
  %s2 = sld [smem:[#allocation0]]
  $region18: #{tpu_custom_call.1} parent=0
    _
  %s4 = ssub.s32 1, %s2
  %s5 = scalar_select 0, %s4, %s2
  $region1: #{tpu_custom_call.1} parent=0
    #allocation2 [shape = 'u8[8192]{0}', space=vmem, size = 0x2000, scoped, tag = 'input window, operand 0, single buffered']
    #allocation3 [shape = 's32[1]{0}', space=sflag, size = 0x4, scoped, tag = 'scoped memory for tpu_custom_call.1']
    #allocation4 [shape = 's32[1]{0}', space=sflag, size = 0x4, scoped, tag = 'scoped memory for tpu_custom_call.1']
    #allocation5 [shape = 'u8[8192]{0}', space=vmem, size = 0x2000, scoped, tag = 'output window, operand 0, single buffered']
    %6 = vsyncpa [#allocation3], 0
    %7 = vsyncpa [#allocation4], 0
    // Predicated region
    $region2: #{tpu_custom_call.1} parent=1 // pred_check
      _
    $region3: #{tpu_custom_call.1} parent=1 // pred_check_branch
      %9 = sbr.rel (0) target = $region5
    $region4: #{tpu_custom_call.1} parent=1 // pred_region
      %s11 = ssub.s32 256, 256
      %12 = vsyncadd [#allocation3], %s11
      %s14 = sshll.u32 [#allocation2], 4
      %s15 = int_to_ptr.vmem [resolvable:$true] %s14
      %17 = dma.hbm_to_vmem [thread:$0]  %s0, 256, %s15, [#allocation3]
    $region5: #{tpu_custom_call.1} parent=1 // pred_fallthru
      _
    // Predicated region
    $region6: #{tpu_custom_call.1} parent=1 // pred_check
      _
    $region7: #{tpu_custom_call.1} parent=1 // pred_check_branch
      %19 = sbr.rel (0) target = $region9
    $region8: #{tpu_custom_call.1} parent=1 // pred_region
      %20 = dma.done [#allocation3], 256
    $region9: #{tpu_custom_call.1} parent=1 // pred_fallthru
      _
    %v21 = vld [vmem:[#allocation2] sm:$0x3f]
    %v22 = vld [vmem:[#allocation2 + $0x8] sm:$0x3f]
    %23 = vst [vmem:[#allocation5] sm:$0x3f] %v21
    %24 = vst [vmem:[#allocation5 + $0x8] sm:$0x3f] %v22
    // Predicated region
    $region10: #{tpu_custom_call.1} parent=1 // pred_check
      _
    $region11: #{tpu_custom_call.1} parent=1 // pred_check_branch
      %26 = sbr.rel (0) target = $region13
    $region12: #{tpu_custom_call.1} parent=1 // pred_region
      %s28 = ssub.s32 256, 256
      %29 = vsyncadd [#allocation4], %s28
      %s31 = sshll.u32 [#allocation5], 4
      %s32 = int_to_ptr.vmem [resolvable:$true] %s31
      %34 = dma.vmem_to_hbm [thread:$0]  %s32, 256, %s1, [#allocation4]
    $region13: #{tpu_custom_call.1} parent=1 // pred_fallthru
      _
    // Predicated region
    $region14: #{tpu_custom_call.1} parent=1 // pred_check
      _
    $region15: #{tpu_custom_call.1} parent=1 // pred_check_branch
      %36 = sbr.rel (0) target = $region17
    $region16: #{tpu_custom_call.1} parent=1 // pred_region
      %37 = dma.done [#allocation4], 256
    $region17: #{tpu_custom_call.1} parent=1 // pred_fallthru
      _
    %38 = vsyncpa [#allocation3], 1
    %39 = vsyncpa [#allocation4], 1

</llo_original>
